<compile_context>
chip_gen: v7x
topology: tpu7x:2x2x1
jax: 0.10.0
libtpu: 0.0.40
codegen_flags: <defaults>
</compile_context>

<pallas_src>
import functools

import jax
import jax.numpy as jnp
from jax.experimental import pallas as pl
from jax.experimental.pallas import tpu as pltpu


def _round_up(x, m):
    return ((x + m - 1) // m) * m


# ----------------------------------------------------------------------------
# Fused kernel: one batch tile goes through every layer while resident on-chip.
# ----------------------------------------------------------------------------
def _fused_mlp_kernel(*refs, n_rest, compute_dtype):
    if n_rest > 0:
        x_ref, w0_ref, b0_ref, wh_ref, bh_ref, wo_ref, bo_ref, o_ref = refs
    else:
        x_ref, w0_ref, b0_ref, wo_ref, bo_ref, o_ref = refs
        wh_ref = bh_ref = None

    # Layer 0: Linear (BN folded into W/b) + ReLU. Dropout = identity (eval).
    z = jnp.dot(x_ref[...], w0_ref[...], preferred_element_type=jnp.float32)
    h = jnp.maximum(z + b0_ref[...], 0.0)          # f32 bias-add / ReLU

    # Remaining hidden layers; weights resident in VMEM (single-buffered).
    for l in range(n_rest):                         # static unroll over layers
        z = jnp.dot(h.astype(compute_dtype), wh_ref[l],
                    preferred_element_type=jnp.float32)
        h = jnp.maximum(z + bh_ref[l], 0.0)

    # Output Linear + Sigmoid (lane-dense 128-wide store; real cols sliced out
    # in the wrapper).
    z = jnp.dot(h.astype(compute_dtype), wo_ref[...],
                preferred_element_type=jnp.float32) + bo_ref[...]
    o_ref[...] = jax.nn.sigmoid(z).astype(o_ref.dtype)


def _invariant_spec(block_shape, index_map):
    """Grid-invariant operand: single-buffer it (re-copy is elided anyway)."""
    try:
        return pl.BlockSpec(block_shape, index_map, pipeline_mode=pl.Buffered(1))
    except TypeError:  # older BlockSpec signature without pipeline_mode
        return pl.BlockSpec(block_shape, index_map)


def fused_forward(x_pad, w0, b0, wh, bh, wo, bo, *, tm):
    """x_pad: (B_pad, input_dim) with B_pad % tm == 0; weights lane-dense (x128)."""
    b_pad, input_dim = x_pad.shape
    d = w0.shape[1]
    dout = wo.shape[1]
    n_rest = 0 if wh is None else wh.shape[0]
    compute_dtype = w0.dtype

    # Real VMEM footprint: double-buffered x/out tiles, single-buffered weights,
    # f32 biases; +2 MiB margin for compiler scratch/semaphores.
    wbytes = jnp.dtype(compute_dtype).itemsize
    xbytes = jnp.dtype(x_pad.dtype).itemsize
    footprint = (
        2 * tm * input_dim * xbytes                      # x tile (double-buffered)
        + 2 * tm * dout * 4                              # out tile (double-buffered, f32)
        + (input_dim * d + n_rest * d * d + d * dout) * wbytes   # resident weights
        + (d + n_rest * d + dout) * 4                    # resident biases (f32)
    )
    cap = 48 * 1024 * 1024            # conservative fallback, safe on every gen
    try:
        cap = int(pltpu.get_tpu_info().vmem_capacity_bytes * 3 // 4)  # 25% headroom
    except Exception:
        pass
    vmem_limit = int(min(max(footprint + 2 * 1024 * 1024, 16 * 1024 * 1024), cap))

    in_specs = [
        pl.BlockSpec((tm, input_dim), lambda i: (i, 0)),        # x tile (streamed)
        _invariant_spec((input_dim, d), lambda i: (0, 0)),      # first-layer W
        _invariant_spec((1, d), lambda i: (0, 0)),              # first-layer b
    ]
    args = [x_pad, w0, b0]
    if n_rest > 0:
        in_specs += [
            _invariant_spec((n_rest, d, d), lambda i: (0, 0, 0)),   # hidden W stack
            _invariant_spec((n_rest, 1, d), lambda i: (0, 0, 0)),   # hidden b stack
        ]
        args += [wh, bh]
    in_specs += [
        _invariant_spec((d, dout), lambda i: (0, 0)),           # out W
        _invariant_spec((1, dout), lambda i: (0, 0)),           # out b
    ]
    args += [wo, bo]

    kernel = functools.partial(_fused_mlp_kernel, n_rest=n_rest,
                               compute_dtype=compute_dtype)
    return pl.pallas_call(
        kernel,
        out_shape=jax.ShapeDtypeStruct((b_pad, dout), jnp.float32),
        grid=(b_pad // tm,),
        in_specs=in_specs,
        out_specs=pl.BlockSpec((tm, dout), lambda i: (i, 0)),
        compiler_params=pltpu.CompilerParams(
            dimension_semantics=("parallel",),   # batch tiles shard across TCs
            vmem_limit_bytes=vmem_limit,
        ),
    )(*args)


# ----------------------------------------------------------------------------
# Parameter construction (PyTorch-equivalent shapes) + fused/padded packing.
# ----------------------------------------------------------------------------
def init_raw_params(key, input_dim, n_units, n_layers, out_dim=13):
    """Deterministic synthetic parameters matching SimpleNN's shapes.

    Hidden layer l: w (d_in, n_units), b (n_units,), gamma/beta/mean/var (n_units,).
    Output layer:   w_out (n_units, out_dim), b_out (out_dim,).
    (Weights stored as [in, out] == PyTorch W.T.)
    """
    hidden = []
    d_in = input_dim
    for _ in range(n_layers):
        key, kw, kb, kg, kbeta, km, kv = jax.random.split(key, 7)
        w = jax.random.normal(kw, (d_in, n_units), jnp.float32) * 0.1
        b = jax.random.normal(kb, (n_units,), jnp.float32) * 0.1
        gamma = 1.0 + 0.1 * jax.random.normal(kg, (n_units,), jnp.float32)
        beta = 0.1 * jax.random.normal(kbeta, (n_units,), jnp.float32)
        mean = 0.1 * jax.random.normal(km, (n_units,), jnp.float32)
        var = jnp.abs(1.0 + 0.1 * jax.random.normal(kv, (n_units,), jnp.float32))
        hidden.append((w, b, gamma, beta, mean, var))
        d_in = n_units
    key, kw, kb = jax.random.split(key, 3)
    w_out = jax.random.normal(kw, (d_in, out_dim), jnp.float32) * 0.1
    b_out = jax.random.normal(kb, (out_dim,), jnp.float32) * 0.1
    return {"hidden": hidden, "out": (w_out, b_out)}


def prepare_fused_params(raw, input_dim, n_units, n_layers, out_dim,
                         eps=1e-5, compute_dtype=jnp.float32):
    """Fold eval-mode BN into W/b, pad feature dims lane-dense (x128), cast weights."""
    d = _round_up(n_units, 128)
    dout = _round_up(out_dim, 128)

    folded = []
    for (w, b, gamma, beta, mean, var) in raw["hidden"]:
        scale = gamma / jnp.sqrt(var + eps)       # (n_units,)
        shift = beta - mean * scale
        folded.append((w * scale[None, :], b * scale + shift))

    # First hidden layer keeps its true (unpadded) input width -> no 8x pad of x.
    w0 = jnp.zeros((input_dim, d), jnp.float32).at[:, :n_units].set(folded[0][0])
    b0 = jnp.zeros((1, d), jnp.float32).at[0, :n_units].set(folded[0][1])

    n_rest = n_layers - 1
    if n_rest > 0:
        wh = jnp.zeros((n_rest, d, d), jnp.float32)
        bh = jnp.zeros((n_rest, 1, d), jnp.float32)
        for l in range(n_rest):
            wf, bf = folded[l + 1]
            wh = wh.at[l, :n_units, :n_units].set(wf)
            bh = bh.at[l, 0, :n_units].set(bf)
    else:
        wh = bh = None

    w_out, b_out = raw["out"]
    wo = jnp.zeros((d, dout), jnp.float32).at[:n_units, :out_dim].set(w_out)
    bo = jnp.zeros((1, dout), jnp.float32).at[0, :out_dim].set(b_out)

    # Weights in compute dtype (bf16 ~2x MXU + half weight VMEM/DMA on v6e/v7x);
    # biases stay f32 so bias-add / ReLU / sigmoid run in f32.
    w0 = w0.astype(compute_dtype)
    wh = None if wh is None else wh.astype(compute_dtype)
    wo = wo.astype(compute_dtype)
    return w0, b0, wh, bh, wo, bo


def _choose_tm(b):
    """Batch-tile size: big tiles amortize per-step overhead; keep >=2 grid
    steps on medium batches so the 'parallel' axis can use both v7x cores."""
    b8 = _round_up(b, 8)
    if b8 > 512:
        return 512                                  # multiple of 128, lane-friendly
    if b8 >= 16:
        return _round_up((b8 + 1) // 2, 8)          # at least 2 grid steps
    return b8


@functools.partial(jax.jit, static_argnames=("out_dim",))
def simple_nn_forward(x, w0, b0, wh, bh, wo, bo, *, out_dim):
    """Pad only the batch dim, run the fused kernel, slice real outputs."""
    b, _ = x.shape
    compute_dtype = w0.dtype
    tm = _choose_tm(b)
    b_pad = _round_up(b, tm)
    x = x.astype(compute_dtype)
    if b_pad != b:
        x = jnp.pad(x, ((0, b_pad - b), (0, 0)))
    out = fused_forward(x, w0, b0, wh, bh, wo, bo, tm=tm)
    return out[:b, :out_dim]


def reference_forward(x, raw, eps=1e-5):
    """Pure-JAX reference (unfolded BN, eval mode) for correctness checking."""
    h = x
    for (w, b, gamma, beta, mean, var) in raw["hidden"]:
        z = h @ w + b
        z = (z - mean) / jnp.sqrt(var + eps) * gamma + beta
        h = jnp.maximum(z, 0.0)
    w_out, b_out = raw["out"]
    return jax.nn.sigmoid(h @ w_out + b_out)


if __name__ == "__main__":
    key = jax.random.PRNGKey(0)

    batch = 8
    input_dim = 16
    n_units = 32
    n_layers = 2
    out_dim = 13
    dropout_rate = 0.1  # identity at eval time

    key, kx, kp = jax.random.split(key, 3)
    x = jax.random.normal(kx, (batch, input_dim), jnp.float32)

    raw = init_raw_params(kp, input_dim, n_units, n_layers, out_dim=out_dim)
    ref = reference_forward(x, raw)

    # f32 path: tight validation against the unfolded-BN reference.
    p32 = prepare_fused_params(raw, input_dim, n_units, n_layers, out_dim,
                               compute_dtype=jnp.float32)
    out32 = jax.block_until_ready(simple_nn_forward(x, *p32, out_dim=out_dim))
    assert out32.shape == (batch, out_dim), out32.shape
    assert jnp.allclose(out32, ref, atol=1e-5, rtol=1e-5), "f32 mismatch vs reference"

    # bf16 path (preferred on v6e/v7x): f32 MXU accumulation, looser tolerance.
    p16 = prepare_fused_params(raw, input_dim, n_units, n_layers, out_dim,
                               compute_dtype=jnp.bfloat16)
    out16 = jax.block_until_ready(simple_nn_forward(x, *p16, out_dim=out_dim))
    assert out16.shape == (batch, out_dim), out16.shape
    assert jnp.allclose(out16, ref, atol=2e-2, rtol=2e-2), "bf16 mismatch vs reference"

    print("KERNEL_OK")
</pallas_src>

<mosaic_0001>
module attributes {stable_mosaic.version = 11 : i64} {
  func.func @_fused_mlp_kernel(%arg0: i32, %arg1: memref<8x16xf32, #tpu.memory_space<vmem>>, %arg2: memref<16x128xf32, #tpu.memory_space<vmem>>, %arg3: memref<1x128xf32, #tpu.memory_space<vmem>>, %arg4: memref<1x128x128xf32, #tpu.memory_space<vmem>>, %arg5: memref<1x1x128xf32, #tpu.memory_space<vmem>>, %arg6: memref<128x128xf32, #tpu.memory_space<vmem>>, %arg7: memref<1x128xf32, #tpu.memory_space<vmem>>, %arg8: memref<8x128xf32, #tpu.memory_space<vmem>>) attributes {dimension_semantics = [#tpu.dimension_semantics<parallel>], iteration_bounds = array<i64: 1>, scalar_prefetch = 0 : i64, scratch_operands = 0 : i64, tpu.core_type = #tpu.core_type<tc>, window_params = [{transform_indices = @transform_0, window_bounds = array<i64: 8, 16>}, {pipeline_mode = #tpu.pipeline_mode<synchronous>, transform_indices = @transform_1, window_bounds = array<i64: 16, 128>}, {pipeline_mode = #tpu.pipeline_mode<synchronous>, transform_indices = @transform_2, window_bounds = array<i64: 1, 128>}, {pipeline_mode = #tpu.pipeline_mode<synchronous>, transform_indices = @transform_3, window_bounds = array<i64: 1, 128, 128>}, {pipeline_mode = #tpu.pipeline_mode<synchronous>, transform_indices = @transform_4, window_bounds = array<i64: 1, 1, 128>}, {pipeline_mode = #tpu.pipeline_mode<synchronous>, transform_indices = @transform_5, window_bounds = array<i64: 128, 128>}, {pipeline_mode = #tpu.pipeline_mode<synchronous>, transform_indices = @transform_6, window_bounds = array<i64: 1, 128>}, {transform_indices = @transform_7, window_bounds = array<i64: 8, 128>}]} {
    %c0 = arith.constant 0 : index
    %c0_0 = arith.constant 0 : index
    %0 = vector.load %arg1[%c0, %c0_0] : memref<8x16xf32, #tpu.memory_space<vmem>>, vector<8x16xf32>
    %c0_1 = arith.constant 0 : index
    %c0_2 = arith.constant 0 : index
    %1 = vector.load %arg2[%c0_1, %c0_2] : memref<16x128xf32, #tpu.memory_space<vmem>>, vector<16x128xf32>
    %cst = arith.constant dense<0.000000e+00> : vector<8x128xf32>
    %2 = tpu.matmul %0, %1, %cst {dimension_numbers = #tpu.dot_dimension_numbers<[1], [0], [0], [1], [0, 0, 1, 1], [], []>} : vector<8x16xf32>, vector<16x128xf32>, vector<8x128xf32> -> vector<8x128xf32>
    %c0_3 = arith.constant 0 : index
    %c0_4 = arith.constant 0 : index
    %3 = vector.load %arg3[%c0_3, %c0_4] : memref<1x128xf32, #tpu.memory_space<vmem>>, vector<1x128xf32>
    %4 = vector.broadcast %3 : vector<1x128xf32> to vector<8x128xf32>
    %5 = arith.addf %2, %4 : vector<8x128xf32>
    %cst_5 = arith.constant 0.000000e+00 : f32
    %6 = vector.broadcast %cst_5 : f32 to vector<8x128xf32>
    %7 = arith.maximumf %5, %6 : vector<8x128xf32>
    %c0_6 = arith.constant 0 : index
    %c0_7 = arith.constant 0 : index
    %c0_8 = arith.constant 0 : index
    %8 = vector.load %arg4[%c0_6, %c0_7, %c0_8] : memref<1x128x128xf32, #tpu.memory_space<vmem>>, vector<1x128x128xf32>
    %9 = vector.shape_cast %8 : vector<1x128x128xf32> to vector<128x128xf32>
    %cst_9 = arith.constant dense<0.000000e+00> : vector<8x128xf32>
    %10 = tpu.matmul %7, %9, %cst_9 {dimension_numbers = #tpu.dot_dimension_numbers<[1], [0], [0], [1], [0, 0, 1, 1], [], []>} : vector<8x128xf32>, vector<128x128xf32>, vector<8x128xf32> -> vector<8x128xf32>
    %c0_10 = arith.constant 0 : index
    %c0_11 = arith.constant 0 : index
    %c0_12 = arith.constant 0 : index
    %11 = vector.load %arg5[%c0_10, %c0_11, %c0_12] : memref<1x1x128xf32, #tpu.memory_space<vmem>>, vector<1x1x128xf32>
    %12 = vector.shape_cast %11 : vector<1x1x128xf32> to vector<1x128xf32>
    %13 = vector.broadcast %12 : vector<1x128xf32> to vector<8x128xf32>
    %14 = arith.addf %10, %13 : vector<8x128xf32>
    %cst_13 = arith.constant 0.000000e+00 : f32
    %15 = vector.broadcast %cst_13 : f32 to vector<8x128xf32>
    %16 = arith.maximumf %14, %15 : vector<8x128xf32>
    %c0_14 = arith.constant 0 : index
    %c0_15 = arith.constant 0 : index
    %17 = vector.load %arg6[%c0_14, %c0_15] : memref<128x128xf32, #tpu.memory_space<vmem>>, vector<128x128xf32>
    %cst_16 = arith.constant dense<0.000000e+00> : vector<8x128xf32>
    %18 = tpu.matmul %16, %17, %cst_16 {dimension_numbers = #tpu.dot_dimension_numbers<[1], [0], [0], [1], [0, 0, 1, 1], [], []>} : vector<8x128xf32>, vector<128x128xf32>, vector<8x128xf32> -> vector<8x128xf32>
    %c0_17 = arith.constant 0 : index
    %c0_18 = arith.constant 0 : index
    %19 = vector.load %arg7[%c0_17, %c0_18] : memref<1x128xf32, #tpu.memory_space<vmem>>, vector<1x128xf32>
    %20 = vector.broadcast %19 : vector<1x128xf32> to vector<8x128xf32>
    %21 = arith.addf %18, %20 : vector<8x128xf32>
    %22 = arith.negf %21 : vector<8x128xf32>
    %23 = math.exp %22 : vector<8x128xf32>
    %cst_19 = arith.constant 1.000000e+00 : f32
    %24 = vector.broadcast %cst_19 : f32 to vector<8x128xf32>
    %25 = arith.addf %24, %23 : vector<8x128xf32>
    %26 = arith.divf %24, %25 : vector<8x128xf32>
    %c0_20 = arith.constant 0 : index
    %c0_21 = arith.constant 0 : index
    %27 = vector.load %arg8[%c0_20, %c0_21] : memref<8x128xf32, #tpu.memory_space<vmem>>, vector<8x128xf32>
    tpu.vector_store %arg8[%c0_20, %c0_21], %26 {strides = array<i32>} : memref<8x128xf32, #tpu.memory_space<vmem>>, vector<8x128xf32>,
    return
  }
  func.func @transform_0(%arg0: i32) -> (i32, i32) {
    %c0_i32 = arith.constant 0 : i32
    %c0_i32_0 = arith.constant 0 : i32
    return %arg0, %c0_i32 : i32, i32
  }
  func.func @transform_1(%arg0: i32) -> (i32, i32) {
    %c0_i32 = arith.constant 0 : i32
    %c0_i32_0 = arith.constant 0 : i32
    %c0_i32_1 = arith.constant 0 : i32
    return %c0_i32, %c0_i32_0 : i32, i32
  }
  func.func @transform_2(%arg0: i32) -> (i32, i32) {
    %c0_i32 = arith.constant 0 : i32
    %c0_i32_0 = arith.constant 0 : i32
    %c0_i32_1 = arith.constant 0 : i32
    return %c0_i32, %c0_i32_0 : i32, i32
  }
  func.func @transform_3(%arg0: i32) -> (i32, i32, i32) {
    %c0_i32 = arith.constant 0 : i32
    %c0_i32_0 = arith.constant 0 : i32
    %c0_i32_1 = arith.constant 0 : i32
    %c0_i32_2 = arith.constant 0 : i32
    return %c0_i32, %c0_i32_0, %c0_i32_1 : i32, i32, i32
  }
  func.func @transform_4(%arg0: i32) -> (i32, i32, i32) {
    %c0_i32 = arith.constant 0 : i32
    %c0_i32_0 = arith.constant 0 : i32
    %c0_i32_1 = arith.constant 0 : i32
    %c0_i32_2 = arith.constant 0 : i32
    return %c0_i32, %c0_i32_0, %c0_i32_1 : i32, i32, i32
  }
  func.func @transform_5(%arg0: i32) -> (i32, i32) {
    %c0_i32 = arith.constant 0 : i32
    %c0_i32_0 = arith.constant 0 : i32
    %c0_i32_1 = arith.constant 0 : i32
    return %c0_i32, %c0_i32_0 : i32, i32
  }
  func.func @transform_6(%arg0: i32) -> (i32, i32) {
    %c0_i32 = arith.constant 0 : i32
    %c0_i32_0 = arith.constant 0 : i32
    %c0_i32_1 = arith.constant 0 : i32
    return %c0_i32, %c0_i32_0 : i32, i32
  }
  func.func @transform_7(%arg0: i32) -> (i32, i32) {
    %c0_i32 = arith.constant 0 : i32
    %c0_i32_0 = arith.constant 0 : i32
    return %arg0, %c0_i32 : i32, i32
  }
}

</mosaic_0001>

<llo_original>
// kernel: simple_nn_forward.1
$region0: #{simple_nn_forward.1}
  #allocation0 [shape = 'u32[]', space=smem, size = 0x4, offset = 0x4, fixed_abs, tag = 'smem constant byte address 0x4 - core index']
  #allocation1 [shape = 'u32[144,128]{1,0:T(1,128)}', space=vmem, size = 0x12000, scoped, tag = 'internal scratch']
  %s0 = inlined_call_operand.hbm [shape: f32[8,16], index: 0, kind: input, shape index: {}]
  %s1 = inlined_call_operand.hbm [shape: f32[16,128], index: 1, kind: input, shape index: {}]
  %s2 = inlined_call_operand.vmem [shape: f32[1,128], index: 2, kind: input, shape index: {}]
  %s3 = inlined_call_operand.hbm [shape: f32[1,128,128], index: 3, kind: input, shape index: {}]
  %s4 = inlined_call_operand.vmem [shape: f32[1,1,128], index: 4, kind: input, shape index: {}]
  %s5 = inlined_call_operand.hbm [shape: f32[128,128], index: 5, kind: input, shape index: {}]
  %s6 = inlined_call_operand.vmem [shape: f32[1,128], index: 6, kind: input, shape index: {}]
  %s7 = inlined_call_operand.hbm [shape: f32[8,128], index: 7, kind: output, shape index: {}]
  %s8 = sld [smem:[#allocation0]]
  $region54: #{simple_nn_forward.1} parent=0
    _
  %s10 = ssub.s32 1, %s8
  %s11 = scalar_select 0, %s10, %s8
  $region1: #{simple_nn_forward.1} parent=0
    #allocation2 [shape = 'u8[4096]{0}', space=vmem, size = 0x1000, scoped, tag = 'input window, operand 0, single buffered']
    #allocation3 [shape = 's32[1]{0}', space=sflag, size = 0x4, scoped, tag = 'scoped memory for simple_nn_forward.1']
    #allocation4 [shape = 's32[1]{0}', space=sflag, size = 0x4, scoped, tag = 'scoped memory for simple_nn_forward.1']
    #allocation5 [shape = 'u8[8192]{0}', space=vmem, size = 0x2000, scoped, tag = 'input window, operand 1, single buffered']
    #allocation6 [shape = 's32[1]{0}', space=sflag, size = 0x4, scoped, tag = 'scoped memory for simple_nn_forward.1']
    #allocation7 [shape = 'u8[65536]{0}', space=vmem, size = 0x10000, scoped, tag = 'input window, operand 3, single buffered']
    #allocation8 [shape = 'u8[65536]{0}', space=vmem, size = 0x10000, scoped, tag = 'input window, operand 5, single buffered']
    #allocation9 [shape = 's32[1]{0}', space=sflag, size = 0x4, scoped, tag = 'scoped memory for simple_nn_forward.1']
    #allocation10 [shape = 'u8[4096]{0}', space=vmem, size = 0x1000, scoped, tag = 'output window, operand 0, single buffered']
    %12 = vsyncpa [#allocation3], 0
    %13 = vsyncpa [#allocation6], 0
    %14 = vsyncpa [#allocation9], 0
    %15 = vsyncpa [#allocation4], 0
    // Predicated region
    $region2: #{simple_nn_forward.1} parent=1 // pred_check
      _
    $region3: #{simple_nn_forward.1} parent=1 // pred_check_branch
      %17 = sbr.rel (0) target = $region5
    $region4: #{simple_nn_forward.1} parent=1 // pred_region
      %s19 = ssub.s32 128, 128
      %20 = vsyncadd [#allocation3], %s19
      %s22 = sshll.u32 [#allocation2], 4
      %s23 = int_to_ptr.vmem [resolvable:$true] %s22
      %25 = dma.hbm_to_vmem [thread:$0]  %s0, 128, %s23, [#allocation3]
    $region5: #{simple_nn_forward.1} parent=1 // pred_fallthru
      _
    // Predicated region
    $region6: #{simple_nn_forward.1} parent=1 // pred_check
      _
    $region7: #{simple_nn_forward.1} parent=1 // pred_check_branch
      %27 = sbr.rel (0) target = $region9
    $region8: #{simple_nn_forward.1} parent=1 // pred_region
      %s29 = ssub.s32 256, 256
      %30 = vsyncadd [#allocation6], %s29
      %s31 = sshll.u32 [#allocation5], 4
      %s32 = int_to_ptr.vmem [resolvable:$true] %s31
      %37 = dma.hbm_to_vmem [thread:$0]  %s1, 256, %s32, [#allocation6], 128, 128, 8
    $region9: #{simple_nn_forward.1} parent=1 // pred_fallthru
      _
    // Predicated region
    $region10: #{simple_nn_forward.1} parent=1 // pred_check
      _
    $region11: #{simple_nn_forward.1} parent=1 // pred_check_branch
      %39 = sbr.rel (0) target = $region13
    $region12: #{simple_nn_forward.1} parent=1 // pred_region
      _
    $region13: #{simple_nn_forward.1} parent=1 // pred_fallthru
      _
    // Predicated region
    $region14: #{simple_nn_forward.1} parent=1 // pred_check
      _
    $region15: #{simple_nn_forward.1} parent=1 // pred_check_branch
      %41 = sbr.rel (0) target = $region17
    $region16: #{simple_nn_forward.1} parent=1 // pred_region
      %s43 = ssub.s32 2048, 2048
      %44 = vsyncadd [#allocation6], %s43
      %s45 = sshll.u32 [#allocation7], 4
      %s46 = int_to_ptr.vmem [resolvable:$true] %s45
      %51 = dma.hbm_to_vmem [thread:$0]  %s3, 2048, %s46, [#allocation6], 128, 128, 8
    $region17: #{simple_nn_forward.1} parent=1 // pred_fallthru
      _
    // Predicated region
    $region18: #{simple_nn_forward.1} parent=1 // pred_check
      _
    $region19: #{simple_nn_forward.1} parent=1 // pred_check_branch
      %53 = sbr.rel (0) target = $region21
    $region20: #{simple_nn_forward.1} parent=1 // pred_region
      _
    $region21: #{simple_nn_forward.1} parent=1 // pred_fallthru
      _
    // Predicated region
    $region22: #{simple_nn_forward.1} parent=1 // pred_check
      _
    $region23: #{simple_nn_forward.1} parent=1 // pred_check_branch
      %55 = sbr.rel (0) target = $region25
    $region24: #{simple_nn_forward.1} parent=1 // pred_region
      %s57 = ssub.s32 2048, 2048
      %58 = vsyncadd [#allocation9], %s57
      %s59 = sshll.u32 [#allocation8], 4
      %s60 = int_to_ptr.vmem [resolvable:$true] %s59
      %65 = dma.hbm_to_vmem [thread:$0]  %s5, 2048, %s60, [#allocation9], 128, 128, 8
    $region25: #{simple_nn_forward.1} parent=1 // pred_fallthru
      _
    // Predicated region
    $region26: #{simple_nn_forward.1} parent=1 // pred_check
      _
    $region27: #{simple_nn_forward.1} parent=1 // pred_check_branch
      %67 = sbr.rel (0) target = $region29
    $region28: #{simple_nn_forward.1} parent=1 // pred_region
      _
    $region29: #{simple_nn_forward.1} parent=1 // pred_fallthru
      _
    // Predicated region
    $region30: #{simple_nn_forward.1} parent=1 // pred_check
      _
    $region31: #{simple_nn_forward.1} parent=1 // pred_check_branch
      %69 = sbr.rel (0) target = $region33
    $region32: #{simple_nn_forward.1} parent=1 // pred_region
      %70 = dma.done [#allocation3], 128
    $region33: #{simple_nn_forward.1} parent=1 // pred_fallthru
      _
    // Predicated region
    $region34: #{simple_nn_forward.1} parent=1 // pred_check
      _
    $region35: #{simple_nn_forward.1} parent=1 // pred_check_branch
      %72 = sbr.rel (0) target = $region37
    $region36: #{simple_nn_forward.1} parent=1 // pred_region
      %73 = dma.done [#allocation6], 256
    $region37: #{simple_nn_forward.1} parent=1 // pred_fallthru
      _
    // Predicated region
    $region38: #{simple_nn_forward.1} parent=1 // pred_check
      _
    $region39: #{simple_nn_forward.1} parent=1 // pred_check_branch
      %75 = sbr.rel (0) target = $region41
    $region40: #{simple_nn_forward.1} parent=1 // pred_region
      %76 = dma.done [#allocation6], 2048
    $region41: #{simple_nn_forward.1} parent=1 // pred_fallthru
      _
    // Predicated region
    $region42: #{simple_nn_forward.1} parent=1 // pred_check
      _
    $region43: #{simple_nn_forward.1} parent=1 // pred_check_branch
      %78 = sbr.rel (0) target = $region45
    $region44: #{simple_nn_forward.1} parent=1 // pred_region
      %79 = dma.done [#allocation9], 2048
    $region45: #{simple_nn_forward.1} parent=1 // pred_fallthru
      _
    %v80 = vld [vmem:[#allocation2] sm:$0xff]
    %v81 = vld [vmem:[#allocation5] sm:$0xff]
    %v82 = vld [vmem:[#allocation5 + $0x8] sm:$0xff]
    %v83 = vld [vmem:[%s2] sm:$0x1]
    %v85 = vlaneseq
    %v86 = vshrl.u32 %v85, 7
    %v87 = vsub.s32 0, %v86
    %v88 = vrot.slane %v83, %v87
    %vm90 = vcmask 130048
    %v92 = vsel %vm90, %v80, 0
    %94 = vmatprep.subr.mxu0 0.0
    %95 = vmatpush1.msra.mxu0 %v81
    %96 = vmatprep.subr.mxu0 0.0
    %97 = vmatpush1.msra.mxu0 %v82
    %98 = vmatprep.subr.mxu0 0.0
    %99 = vmatpush1.msra.mxu0 0.0
    %100 = vmatprep.subr.mxu0 0.0
    %101 = vmatpush1.msra.mxu0 0.0
    %102 = vmatprep.subr.mxu0 0.0
    %103 = vmatpush1.msra.mxu0 0.0
    %104 = vmatprep.subr.mxu0 0.0
    %105 = vmatpush1.msra.mxu0 0.0
    %106 = vmatprep.subr.mxu0 0.0
    %107 = vmatpush1.msra.mxu0 0.0
    %108 = vmatprep.subr.mxu0 0.0
    %109 = vmatpush1.msra.mxu0 0.0
    %110 = vmatprep.subr.mxu0 0.0
    %111 = vmatpush1.msra.mxu0 0.0
    %112 = vmatprep.subr.mxu0 0.0
    %113 = vmatpush1.msra.mxu0 0.0
    %114 = vmatprep.subr.mxu0 0.0
    %115 = vmatpush1.msra.mxu0 0.0
    %116 = vmatprep.subr.mxu0 0.0
    %117 = vmatpush1.msra.mxu0 0.0
    %118 = vmatprep.subr.mxu0 0.0
    %119 = vmatpush1.msra.mxu0 0.0
    %120 = vmatprep.subr.mxu0 0.0
    %121 = vmatpush1.msra.mxu0 0.0
    %122 = vmatprep.subr.mxu0 0.0
    %123 = vmatpush1.msra.mxu0 0.0
    %124 = vmatprep.subr.mxu0 0.0
    %125 = vmatpush1.msra.mxu0 0.0
    %126 = vmatprep.subr.mxu0 0.0
    %127 = vmatpush1.msra.mxu0 0.0
    %128 = vmatprep.subr.mxu0 0.0
    %129 = vmatpush1.msra.mxu0 0.0
    %130 = vmatprep.subr.mxu0 0.0
    %131 = vmatpush1.msra.mxu0 0.0
    %132 = vmatprep.subr.mxu0 0.0
    %133 = vmatpush1.msra.mxu0 0.0
    %134 = vmatprep.subr.mxu0 0.0
    %135 = vmatpush1.msra.mxu0 0.0
    %136 = vmatprep.subr.mxu0 0.0
    %137 = vmatpush1.msra.mxu0 0.0
    %138 = vmatprep.subr.mxu0 0.0
    %139 = vmatpush1.msra.mxu0 0.0
    %140 = vmatprep.subr.mxu0 0.0
    %141 = vmatpush1.msra.mxu0 0.0
    %142 = vmatprep.subr.mxu0 0.0
    %143 = vmatpush1.msra.mxu0 0.0
    %144 = vmatprep.subr.mxu0 0.0
    %145 = vmatpush1.msra.mxu0 0.0
    %146 = vmatprep.subr.mxu0 0.0
    %147 = vmatpush1.msra.mxu0 0.0
    %148 = vmatprep.subr.mxu0 0.0
    %149 = vmatpush1.msra.mxu0 0.0
    %150 = vmatprep.subr.mxu0 0.0
    %151 = vmatpush1.msra.mxu0 0.0
    %152 = vmatprep.subr.mxu0 0.0
    %153 = vmatpush1.msra.mxu0 0.0
    %154 = vmatprep.subr.mxu0 0.0
    %155 = vmatpush1.msra.mxu0 0.0
    %156 = vmatprep.subr.mxu0 0.0
    %157 = vmatpush1.msra.mxu0 0.0
    %158 = vmatprep.mubr.f32.mxu0 0.0
    %159 = vmatmul.mubr.f32.gmra.mrb[0].mxu0 %v92
    %v160 = vpop.f32.mrb[0].mxu0
    %v161 = vadd.f32 %v88, %v160
    %v162 = vpop.f32.mrb[0].mxu0
    %163 = vdwg.mxu0
    %v164 = vmax.f32 %v161, 0.0
    %v165 = vld [vmem:[#allocation7] sm:$0xff]
    %v166 = vld [vmem:[#allocation7 + $0x8] sm:$0xff]
    %v167 = vld [vmem:[#allocation7 + $0x10] sm:$0xff]
    %v168 = vld [vmem:[#allocation7 + $0x18] sm:$0xff]
    %v169 = vld [vmem:[#allocation7 + $0x20] sm:$0xff]
    %v170 = vld [vmem:[#allocation7 + $0x28] sm:$0xff]
    %v171 = vld [vmem:[#allocation7 + $0x30] sm:$0xff]
    %v172 = vld [vmem:[#allocation7 + $0x38] sm:$0xff]
    %v173 = vld [vmem:[#allocation7 + $0x40] sm:$0xff]
    %v174 = vld [vmem:[#allocation7 + $0x48] sm:$0xff]
    %v175 = vld [vmem:[#allocation7 + $0x50] sm:$0xff]
    %v176 = vld [vmem:[#allocation7 + $0x58] sm:$0xff]
    %v177 = vld [vmem:[#allocation7 + $0x60] sm:$0xff]
    %v178 = vld [vmem:[#allocation7 + $0x68] sm:$0xff]
    %v179 = vld [vmem:[#allocation7 + $0x70] sm:$0xff]
    %v180 = vld [vmem:[#allocation7 + $0x78] sm:$0xff]
    %v181 = vld [vmem:[%s4] sm:$0x1]
    %v183 = vlaneseq
    %v184 = vshrl.u32 %v183, 7
    %v185 = vsub.s32 0, %v184
    %v186 = vrot.slane %v181, %v185
    %188 = vmatprep.subr.mxu0 0.0
    %189 = vmatpush1.msra.mxu0 %v165
    %190 = vmatprep.subr.mxu0 0.0
    %191 = vmatpush1.msra.mxu0 %v166
    %192 = vmatprep.subr.mxu0 0.0
    %193 = vmatpush1.msra.mxu0 %v167
    %194 = vmatprep.subr.mxu0 0.0
    %195 = vmatpush1.msra.mxu0 %v168
    %196 = vmatprep.subr.mxu0 0.0
    %197 = vmatpush1.msra.mxu0 %v169
    %198 = vmatprep.subr.mxu0 0.0
    %199 = vmatpush1.msra.mxu0 %v170
    %200 = vmatprep.subr.mxu0 0.0
    %201 = vmatpush1.msra.mxu0 %v171
    %202 = vmatprep.subr.mxu0 0.0
    %203 = vmatpush1.msra.mxu0 %v172
    %204 = vmatprep.subr.mxu0 0.0
    %205 = vmatpush1.msra.mxu0 %v173
    %206 = vmatprep.subr.mxu0 0.0
    %207 = vmatpush1.msra.mxu0 %v174
    %208 = vmatprep.subr.mxu0 0.0
    %209 = vmatpush1.msra.mxu0 %v175
    %210 = vmatprep.subr.mxu0 0.0
    %211 = vmatpush1.msra.mxu0 %v176
    %212 = vmatprep.subr.mxu0 0.0
    %213 = vmatpush1.msra.mxu0 %v177
    %214 = vmatprep.subr.mxu0 0.0
    %215 = vmatpush1.msra.mxu0 %v178
    %216 = vmatprep.subr.mxu0 0.0
    %217 = vmatpush1.msra.mxu0 %v179
    %218 = vmatprep.subr.mxu0 0.0
    %219 = vmatpush1.msra.mxu0 %v180
    %220 = vmatprep.subr.mxu0 0.0
    %221 = vmatpush1.msra.mxu0 0.0
    %222 = vmatprep.subr.mxu0 0.0
    %223 = vmatpush1.msra.mxu0 0.0
    %224 = vmatprep.subr.mxu0 0.0
    %225 = vmatpush1.msra.mxu0 0.0
    %226 = vmatprep.subr.mxu0 0.0
    %227 = vmatpush1.msra.mxu0 0.0
    %228 = vmatprep.subr.mxu0 0.0
    %229 = vmatpush1.msra.mxu0 0.0
    %230 = vmatprep.subr.mxu0 0.0
    %231 = vmatpush1.msra.mxu0 0.0
    %232 = vmatprep.subr.mxu0 0.0
    %233 = vmatpush1.msra.mxu0 0.0
    %234 = vmatprep.subr.mxu0 0.0
    %235 = vmatpush1.msra.mxu0 0.0
    %236 = vmatprep.subr.mxu0 0.0
    %237 = vmatpush1.msra.mxu0 0.0
    %238 = vmatprep.subr.mxu0 0.0
    %239 = vmatpush1.msra.mxu0 0.0
    %240 = vmatprep.subr.mxu0 0.0
    %241 = vmatpush1.msra.mxu0 0.0
    %242 = vmatprep.subr.mxu0 0.0
    %243 = vmatpush1.msra.mxu0 0.0
    %244 = vmatprep.subr.mxu0 0.0
    %245 = vmatpush1.msra.mxu0 0.0
    %246 = vmatprep.subr.mxu0 0.0
    %247 = vmatpush1.msra.mxu0 0.0
    %248 = vmatprep.subr.mxu0 0.0
    %249 = vmatpush1.msra.mxu0 0.0
    %250 = vmatprep.subr.mxu0 0.0
    %251 = vmatpush1.msra.mxu0 0.0
    %252 = vmatprep.mubr.f32.mxu0 0.0
    %253 = vmatmul.mubr.f32.gmra.mrb[0].mxu0 %v164
    %v254 = vpop.f32.mrb[0].mxu0
    %v255 = vadd.f32 %v186, %v254
    %v256 = vpop.f32.mrb[0].mxu0
    %257 = vdwg.mxu0
    %v258 = vmax.f32 %v255, 0.0
    %v259 = vld [vmem:[#allocation8] sm:$0xff]
    %v260 = vld [vmem:[#allocation8 + $0x8] sm:$0xff]
    %v261 = vld [vmem:[#allocation8 + $0x10] sm:$0xff]
    %v262 = vld [vmem:[#allocation8 + $0x18] sm:$0xff]
    %v263 = vld [vmem:[#allocation8 + $0x20] sm:$0xff]
    %v264 = vld [vmem:[#allocation8 + $0x28] sm:$0xff]
    %v265 = vld [vmem:[#allocation8 + $0x30] sm:$0xff]
    %v266 = vld [vmem:[#allocation8 + $0x38] sm:$0xff]
    %v267 = vld [vmem:[#allocation8 + $0x40] sm:$0xff]
    %v268 = vld [vmem:[#allocation8 + $0x48] sm:$0xff]
    %v269 = vld [vmem:[#allocation8 + $0x50] sm:$0xff]
    %v270 = vld [vmem:[#allocation8 + $0x58] sm:$0xff]
    %v271 = vld [vmem:[#allocation8 + $0x60] sm:$0xff]
    %v272 = vld [vmem:[#allocation8 + $0x68] sm:$0xff]
    %v273 = vld [vmem:[#allocation8 + $0x70] sm:$0xff]
    %v274 = vld [vmem:[#allocation8 + $0x78] sm:$0xff]
    %v275 = vld [vmem:[%s6] sm:$0x1]
    %v277 = vlaneseq
    %v278 = vshrl.u32 %v277, 7
    %v279 = vsub.s32 0, %v278
    %v280 = vrot.slane %v275, %v279
    %282 = vmatprep.subr.mxu0 0.0
    %283 = vmatpush1.msra.mxu0 %v259
    %284 = vmatprep.subr.mxu0 0.0
    %285 = vmatpush1.msra.mxu0 %v260
    %286 = vmatprep.subr.mxu0 0.0
    %287 = vmatpush1.msra.mxu0 %v261
    %288 = vmatprep.subr.mxu0 0.0
    %289 = vmatpush1.msra.mxu0 %v262
    %290 = vmatprep.subr.mxu0 0.0
    %291 = vmatpush1.msra.mxu0 %v263
    %292 = vmatprep.subr.mxu0 0.0
    %293 = vmatpush1.msra.mxu0 %v264
    %294 = vmatprep.subr.mxu0 0.0
    %295 = vmatpush1.msra.mxu0 %v265
    %296 = vmatprep.subr.mxu0 0.0
    %297 = vmatpush1.msra.mxu0 %v266
    %298 = vmatprep.subr.mxu0 0.0
    %299 = vmatpush1.msra.mxu0 %v267
    %300 = vmatprep.subr.mxu0 0.0
    %301 = vmatpush1.msra.mxu0 %v268
    %302 = vmatprep.subr.mxu0 0.0
    %303 = vmatpush1.msra.mxu0 %v269
    %304 = vmatprep.subr.mxu0 0.0
    %305 = vmatpush1.msra.mxu0 %v270
    %306 = vmatprep.subr.mxu0 0.0
    %307 = vmatpush1.msra.mxu0 %v271
    %308 = vmatprep.subr.mxu0 0.0
    %309 = vmatpush1.msra.mxu0 %v272
    %310 = vmatprep.subr.mxu0 0.0
    %311 = vmatpush1.msra.mxu0 %v273
    %312 = vmatprep.subr.mxu0 0.0
    %313 = vmatpush1.msra.mxu0 %v274
    %314 = vmatprep.subr.mxu0 0.0
    %315 = vmatpush1.msra.mxu0 0.0
    %316 = vmatprep.subr.mxu0 0.0
    %317 = vmatpush1.msra.mxu0 0.0
    %318 = vmatprep.subr.mxu0 0.0
    %319 = vmatpush1.msra.mxu0 0.0
    %320 = vmatprep.subr.mxu0 0.0
    %321 = vmatpush1.msra.mxu0 0.0
    %322 = vmatprep.subr.mxu0 0.0
    %323 = vmatpush1.msra.mxu0 0.0
    %324 = vmatprep.subr.mxu0 0.0
    %325 = vmatpush1.msra.mxu0 0.0
    %326 = vmatprep.subr.mxu0 0.0
    %327 = vmatpush1.msra.mxu0 0.0
    %328 = vmatprep.subr.mxu0 0.0
    %329 = vmatpush1.msra.mxu0 0.0
    %330 = vmatprep.subr.mxu0 0.0
    %331 = vmatpush1.msra.mxu0 0.0
    %332 = vmatprep.subr.mxu0 0.0
    %333 = vmatpush1.msra.mxu0 0.0
    %334 = vmatprep.subr.mxu0 0.0
    %335 = vmatpush1.msra.mxu0 0.0
    %336 = vmatprep.subr.mxu0 0.0
    %337 = vmatpush1.msra.mxu0 0.0
    %338 = vmatprep.subr.mxu0 0.0
    %339 = vmatpush1.msra.mxu0 0.0
    %340 = vmatprep.subr.mxu0 0.0
    %341 = vmatpush1.msra.mxu0 0.0
    %342 = vmatprep.subr.mxu0 0.0
    %343 = vmatpush1.msra.mxu0 0.0
    %344 = vmatprep.subr.mxu0 0.0
    %345 = vmatpush1.msra.mxu0 0.0
    %346 = vmatprep.mubr.f32.mxu0 0.0
    %347 = vmatmul.mubr.f32.gmra.mrb[0].mxu0 %v258
    %v348 = vpop.f32.mrb[0].mxu0
    %v349 = vadd.f32 %v280, %v348
    %v350 = vpop.f32.mrb[0].mxu0
    %351 = vdwg.mxu0
    %v352 = vxor.u32 %v349, 2147483648
    %v353 = vmul.f32 %v352, 1.442695
    %v354 = vpow.pop %v353
    %v355 = vadd.f32 %v354, 1.0
    %v356 = vrcp.pop %v355
    %v357 = vmul.f32 1.0, %v356
    %358 = vst [vmem:[#allocation10] sm:$0xff] %v357
    // Predicated region
    $region46: #{simple_nn_forward.1} parent=1 // pred_check
      _
    $region47: #{simple_nn_forward.1} parent=1 // pred_check_branch
      %360 = sbr.rel (0) target = $region49
    $region48: #{simple_nn_forward.1} parent=1 // pred_region
      %s362 = ssub.s32 128, 128
      %363 = vsyncadd [#allocation4], %s362
      %s365 = sshll.u32 [#allocation10], 4
      %s366 = int_to_ptr.vmem [resolvable:$true] %s365
      %368 = dma.vmem_to_hbm [thread:$0]  %s366, 128, %s7, [#allocation4]
    $region49: #{simple_nn_forward.1} parent=1 // pred_fallthru
      _
    // Predicated region
    $region50: #{simple_nn_forward.1} parent=1 // pred_check
      _
    $region51: #{simple_nn_forward.1} parent=1 // pred_check_branch
      %370 = sbr.rel (0) target = $region53
    $region52: #{simple_nn_forward.1} parent=1 // pred_region
      %371 = dma.done [#allocation4], 128
    $region53: #{simple_nn_forward.1} parent=1 // pred_fallthru
      _
    %372 = vsyncpa [#allocation3], 1
    %373 = vsyncpa [#allocation6], 1
    %374 = vsyncpa [#allocation9], 1
    %375 = vsyncpa [#allocation4], 1

</llo_original>
